<compile_context>
chip_gen: v7x
topology: tpu7x:2x2x1
jax: 0.10.0
libtpu: 0.0.40
codegen_flags: <defaults>
</compile_context>

<pallas_src>
import jax
import jax.numpy as jnp
from jax.experimental import pallas as pl
from jax.experimental.pallas import tpu as pltpu


# ----------------------------- kernels -------------------------------------


def _fused_kernel(x_ref, w_ref, out_ref):
    # x_ref:   (TM/pack, pack*in)   activations (pack token rows packed on lanes)
    # w_ref:   (pack*in, pack*out)  block-diagonal effective weight kron(I, W)
    # out_ref: (TM/pack, pack*out)  lane-dense output
    x = x_ref[...].astype(w_ref.dtype)                 # cast stays in-kernel
    out = jnp.dot(x, w_ref[...], preferred_element_type=jnp.float32)
    out_ref[...] = out.astype(out_ref.dtype)


def _factored_kernel(x_ref, a_ref, b_ref, out_ref):
    # x_ref: (TM, in)   a_ref: (in, rank)   b_ref: (rank, out)   out_ref: (TM, out)
    tm = x_ref.shape[0]
    chunk = 256 if tm % 256 == 0 else tm               # tm is a multiple of 256 by construction
    n_chunks = tm // chunk
    a = a_ref[...]                                     # tiny, grid-invariant; hoisted
    b = b_ref[...]

    def body(c, carry):
        r0 = pl.multiple_of(c * chunk, chunk)
        xc = x_ref[pl.ds(r0, chunk), :].astype(a.dtype)
        # (chunk, in) @ (in, rank) -> (chunk, rank): plain M,K @ K,N (no relayout)
        h = jnp.dot(xc, a, preferred_element_type=jnp.float32)
        # (chunk, rank) @ (rank, out) -> (chunk, out)
        oc = jnp.dot(h.astype(b.dtype), b, preferred_element_type=jnp.float32)
        out_ref[pl.ds(r0, chunk), :] = oc.astype(out_ref.dtype)
        return carry

    jax.lax.fori_loop(0, n_chunks, body, 0, unroll=True)


# ----------------------------- wrapper --------------------------------------


def _round_up(x, m):
    return -(-x // m) * m


def _round_down(x, m):
    return (x // m) * m


def _tpu_vmem_and_lanes():
    """Per-generation VMEM capacity and MXU lane target (128 on v5e, 256 on v6e/v7x)."""
    vmem_cap = 64 << 20            # conservative fallback: v7x physical VMEM / core
    lane_target = 128              # safe everywhere (v5e MXU is 128-wide)
    try:
        info = pltpu.get_tpu_info()
        vmem_cap = int(getattr(info, "vmem_capacity_bytes", vmem_cap))
    except Exception:
        pass
    vmem_cap = max(16 << 20, min(vmem_cap, 256 << 20))
    try:
        kind = jax.devices()[0].device_kind.lower()
        if ("v6" in kind) or ("v7" in kind):
            lane_target = 256
    except Exception:
        pass
    return vmem_cap, lane_target


def _pick_tm(n_rows, row_align, per_row_bytes, weight_bytes, budget, cap):
    """Largest row tile fitting the VMEM budget, aligned, data-clamped, >=2 grid steps."""
    avail = budget - weight_bytes
    tm = avail // per_row_bytes if avail > 0 else 0
    tm = max(_round_down(tm, row_align), row_align)
    cap_aligned = _round_down(cap, row_align) if cap >= row_align else row_align
    tm = min(tm, cap_aligned)
    # never bigger than the (aligned) data
    tm = min(tm, _round_up(n_rows, row_align))
    # keep >= 2 grid steps when the data allows, so v7x's 2nd TensorCore has work
    if n_rows >= 2 * row_align:
        tm = min(tm, _round_up(-(-n_rows // 2), row_align))
    return max(tm, row_align)


def quant_low_rank_adapter(x, lora_a, lora_b, *, tm=None, compute_dtype=None,
                           fuse=None):
    """x: (..., in_features); lora_a: (rank, in_features); lora_b: (out_features, rank).

    `tm` (optional) caps the row-tile size; by default it is derived from the
    chip's VMEM budget.  `compute_dtype` sets the MXU operand dtype (e.g.
    jnp.bfloat16 on v6e/v7x); accumulation is always f32 and the output keeps
    x.dtype.
    """
    rank, in_features = lora_a.shape
    out_features, rank_b = lora_b.shape
    assert rank_b == rank
    assert x.shape[-1] == in_features

    w_dtype = jnp.dtype(compute_dtype) if compute_dtype is not None else jnp.dtype(lora_a.dtype)
    out_dtype = jnp.dtype(x.dtype)
    x_bytes = jnp.dtype(x.dtype).itemsize
    out_bytes = out_dtype.itemsize
    w_bytes = w_dtype.itemsize

    vmem_cap, lane_target = _tpu_vmem_and_lanes()
    vmem_budget = int(vmem_cap * 0.75)                       # headroom for scratch/spill
    vmem_limit = min(int(vmem_cap * 0.9), 128 << 20)

    # ---- fold the two matmuls into one effective weight when it wins on MXU ----
    g = lambda d: -(-d // lane_target)                       # MXU granule count
    if fuse is None:
        fuse = (g(in_features) * g(out_features)
                <= g(in_features) * g(rank) + g(rank) * g(out_features)
                and in_features * out_features * w_bytes <= (2 << 20))

    # ---- lane-dense packing factor for the output (fused path only) ----
    pack = 1
    if fuse and out_features < lane_target and lane_target % out_features == 0:
        p = lane_target // out_features
        if (p * in_features) * (p * out_features) * w_bytes <= (2 << 20):
            pack = p

    orig_shape = x.shape
    x2d = x.reshape(-1, in_features)                         # free collapse of leading dims
    n = x2d.shape[0]

    # Only pad to a multiple of `pack` (<= pack-1 rows) when the packed reshape
    # needs it; never to a full tm multiple.
    pad_rows = (-n) % pack
    if pad_rows:
        x2d = jnp.pad(x2d, ((0, pad_rows), (0, 0)))
    n_p = n + pad_rows

    # Row alignment: fused blocks need tm//pack % 8 == 0; factored path uses a
    # 256-row alignment so the in-kernel sub-chunk loop divides evenly.
    row_align = 8 * pack if fuse else 256

    # VMEM bytes per token row (x + out blocks double-buffered, + f32 pre-cast temp).
    per_row = 2 * (in_features * x_bytes + out_features * out_bytes) + out_features * 4
    if fuse:
        weight_vmem = 2 * (pack * in_features) * (pack * out_features) * w_bytes
    else:
        weight_vmem = 2 * rank * (in_features + out_features) * w_bytes

    cap = tm if tm is not None else 8192
    tm_eff = _pick_tm(n_p, row_align, per_row, weight_vmem, vmem_budget, cap)

    compiler_params = pltpu.CompilerParams(
        dimension_semantics=("parallel",),        # megacore sharding on v7x
        vmem_limit_bytes=vmem_limit,              # lift v5e's 16 MiB scoped default
    )

    if fuse:
        # Effective weight W = lora_a.T @ lora_b.T : (in, out), folded in f32.
        w = jnp.matmul(lora_a.T.astype(jnp.float32),
                       lora_b.T.astype(jnp.float32)).astype(w_dtype)
        if pack > 1:
            # kron(I_pack, W): block-diagonal (pack*in, pack*out). With the free
            # row-major reshapes of x / out this makes the kernel's load,
            # matmul and store fully lane-dense (pack*out = 128 or 256 lanes).
            w = jnp.kron(jnp.eye(pack, dtype=w.dtype), w)
        x_in = x2d.reshape(n_p // pack, pack * in_features)  # free reshape
        bm = tm_eff // pack
        grid = (pl.cdiv(n_p // pack, bm),)                   # ragged last block masked

        out = pl.pallas_call(
            _fused_kernel,
            out_shape=jax.ShapeDtypeStruct(
                (n_p // pack, pack * out_features), out_dtype),
            grid_spec=pltpu.PrefetchScalarGridSpec(
                num_scalar_prefetch=0,
                grid=grid,
                in_specs=[
                    pl.BlockSpec((bm, pack * in_features), lambda i: (i, 0)),
                    pl.BlockSpec((pack * in_features, pack * out_features),
                                 lambda i: (0, 0)),
                ],
                out_specs=pl.BlockSpec((bm, pack * out_features),
                                       lambda i: (i, 0)),
            ),
            compiler_params=compiler_params,
        )(x_in, w)
        out = out.reshape(n_p, out_features)                 # free reshape
        if pad_rows:
            out = out[:n]
    else:
        # Pre-transpose the tiny weights once in the wrapper so the kernel does
        # plain (M,K)@(K,N) matmuls (no per-step weight relayout on the XLU).
        a_t = lora_a.T.astype(w_dtype)                       # (in, rank)
        b_t = lora_b.T.astype(w_dtype)                       # (rank, out)
        grid = (pl.cdiv(n_p, tm_eff),)                       # ragged last block masked

        out = pl.pallas_call(
            _factored_kernel,
            out_shape=jax.ShapeDtypeStruct((n_p, out_features), out_dtype),
            grid_spec=pltpu.PrefetchScalarGridSpec(
                num_scalar_prefetch=0,
                grid=grid,
                in_specs=[
                    pl.BlockSpec((tm_eff, in_features), lambda i: (i, 0)),
                    pl.BlockSpec((in_features, rank), lambda i: (0, 0)),
                    pl.BlockSpec((rank, out_features), lambda i: (0, 0)),
                ],
                out_specs=pl.BlockSpec((tm_eff, out_features), lambda i: (i, 0)),
            ),
            compiler_params=compiler_params,
        )(x2d, a_t, b_t)

    return out.reshape(*orig_shape[:-1], out_features)


if __name__ == "__main__":
    # Module hyperparameters (small, consistent with the forward).
    in_features = 64
    out_features = 32
    rank = 4

    key = jax.random.PRNGKey(0)
    k_a, k_b, k_x = jax.random.split(key, 3)

    lora_a = jax.random.normal(k_a, (rank, in_features), dtype=jnp.float32) * 0.1
    lora_b = jax.random.normal(k_b, (out_features, rank), dtype=jnp.float32) * 0.1

    # Example input: (batch=2, seq=8, in_features).
    x = jax.random.normal(k_x, (2, 8, in_features), dtype=jnp.float32)

    # Pure-JAX reference: two linears.
    ref = (x @ lora_a.T) @ lora_b.T

    # Fused (folded-weight, lane-dense packed) path — auto-selected here.
    out = jax.block_until_ready(quant_low_rank_adapter(x, lora_a, lora_b))
    assert out.shape == (2, 8, out_features), out.shape
    assert jnp.allclose(out, ref, atol=1e-4, rtol=1e-4), \
        float(jnp.abs(out - ref).max())

    # Factored (two-matmul LoRA) path — used at large in/out where folding loses.
    out_f = jax.block_until_ready(
        quant_low_rank_adapter(x, lora_a, lora_b, fuse=False))
    assert jnp.allclose(out_f, ref, atol=1e-4, rtol=1e-4), \
        float(jnp.abs(out_f - ref).max())

    # bf16 MXU operands (v6e/v7x fast path), f32 accumulation, f32 output.
    out_bf16 = jax.block_until_ready(
        quant_low_rank_adapter(x, lora_a, lora_b, compute_dtype=jnp.bfloat16))
    assert jnp.allclose(out_bf16, ref, atol=5e-2, rtol=5e-2), \
        float(jnp.abs(out_bf16 - ref).max())

    print("KERNEL_OK")
</pallas_src>

<mosaic_0001>
module attributes {stable_mosaic.version = 11 : i64} {
  func.func @_fused_kernel(%arg0: i32, %arg1: memref<8x256xf32, #tpu.memory_space<vmem>>, %arg2: memref<256x128xf32, #tpu.memory_space<vmem>>, %arg3: memref<8x128xf32, #tpu.memory_space<vmem>>) attributes {dimension_semantics = [#tpu.dimension_semantics<parallel>], iteration_bounds = array<i64: 1>, scalar_prefetch = 0 : i64, scratch_operands = 0 : i64, tpu.core_type = #tpu.core_type<tc>, window_params = [{transform_indices = @transform_0, window_bounds = array<i64: 8, 256>}, {pipeline_mode = #tpu.pipeline_mode<synchronous>, transform_indices = @transform_1, window_bounds = array<i64: 256, 128>}, {transform_indices = @transform_2, window_bounds = array<i64: 8, 128>}]} {
    %c0 = arith.constant 0 : index
    %c0_0 = arith.constant 0 : index
    %0 = vector.load %arg1[%c0, %c0_0] : memref<8x256xf32, #tpu.memory_space<vmem>>, vector<8x256xf32>
    %c0_1 = arith.constant 0 : index
    %c0_2 = arith.constant 0 : index
    %1 = vector.load %arg2[%c0_1, %c0_2] : memref<256x128xf32, #tpu.memory_space<vmem>>, vector<256x128xf32>
    %cst = arith.constant dense<0.000000e+00> : vector<8x128xf32>
    %2 = tpu.matmul %0, %1, %cst {dimension_numbers = #tpu.dot_dimension_numbers<[1], [0], [0], [1], [0, 0, 1, 1], [], []>} : vector<8x256xf32>, vector<256x128xf32>, vector<8x128xf32> -> vector<8x128xf32>
    %c0_3 = arith.constant 0 : index
    %c0_4 = arith.constant 0 : index
    %3 = vector.load %arg3[%c0_3, %c0_4] : memref<8x128xf32, #tpu.memory_space<vmem>>, vector<8x128xf32>
    tpu.vector_store %arg3[%c0_3, %c0_4], %2 {strides = array<i32>} : memref<8x128xf32, #tpu.memory_space<vmem>>, vector<8x128xf32>,
    return
  }
  func.func @transform_0(%arg0: i32) -> (i32, i32) {
    %c0_i32 = arith.constant 0 : i32
    %c0_i32_0 = arith.constant 0 : i32
    return %arg0, %c0_i32 : i32, i32
  }
  func.func @transform_1(%arg0: i32) -> (i32, i32) {
    %c0_i32 = arith.constant 0 : i32
    %c0_i32_0 = arith.constant 0 : i32
    %c0_i32_1 = arith.constant 0 : i32
    return %c0_i32, %c0_i32_0 : i32, i32
  }
  func.func @transform_2(%arg0: i32) -> (i32, i32) {
    %c0_i32 = arith.constant 0 : i32
    %c0_i32_0 = arith.constant 0 : i32
    return %arg0, %c0_i32 : i32, i32
  }
}

</mosaic_0001>

<llo_original>
// kernel: tpu_custom_call.1
$region0: #{tpu_custom_call.1}
  #allocation0 [shape = 'u32[]', space=smem, size = 0x4, offset = 0x4, fixed_abs, tag = 'smem constant byte address 0x4 - core index']
  #allocation1 [shape = 'u32[144,128]{1,0:T(1,128)}', space=vmem, size = 0x12000, scoped, tag = 'internal scratch']
  %s0 = inlined_call_operand.hbm [shape: f32[4,256], index: 0, kind: input, shape index: {}]
  %s1 = inlined_call_operand.hbm [shape: f32[256,128], index: 1, kind: input, shape index: {}]
  %s2 = inlined_call_operand.hbm [shape: f32[4,128], index: 2, kind: output, shape index: {}]
  %s3 = sld [smem:[#allocation0]]
  $region26: #{tpu_custom_call.1} parent=0
    _
  %s5 = ssub.s32 1, %s3
  %s6 = scalar_select 0, %s5, %s3
  $region1: #{tpu_custom_call.1} parent=0
    #allocation2 [shape = 'u8[8192]{0}', space=vmem, size = 0x2000, scoped, tag = 'input window, operand 0, single buffered']
    #allocation3 [shape = 's32[1]{0}', space=sflag, size = 0x4, scoped, tag = 'scoped memory for tpu_custom_call.1']
    #allocation4 [shape = 's32[1]{0}', space=sflag, size = 0x4, scoped, tag = 'scoped memory for tpu_custom_call.1']
    #allocation5 [shape = 'u8[131072]{0}', space=vmem, size = 0x20000, scoped, tag = 'input window, operand 1, single buffered']
    #allocation6 [shape = 's32[1]{0}', space=sflag, size = 0x4, scoped, tag = 'scoped memory for tpu_custom_call.1']
    #allocation7 [shape = 'u8[4096]{0}', space=vmem, size = 0x1000, scoped, tag = 'output window, operand 0, single buffered']
    %7 = vsyncpa [#allocation3], 0
    %8 = vsyncpa [#allocation6], 0
    %9 = vsyncpa [#allocation4], 0
    // Predicated region
    $region2: #{tpu_custom_call.1} parent=1 // pred_check
      _
    $region3: #{tpu_custom_call.1} parent=1 // pred_check_branch
      %11 = sbr.rel (0) target = $region5
    $region4: #{tpu_custom_call.1} parent=1 // pred_region
      %s13 = ssub.s32 256, 128
      %14 = vsyncadd [#allocation3], %s13
      %s15 = sshll.u32 [#allocation2], 4
      %s16 = int_to_ptr.vmem [resolvable:$true] %s15
      %21 = dma.hbm_to_vmem [thread:$0]  %s0, 128, %s16, [#allocation3], 128, 128, 8
    $region5: #{tpu_custom_call.1} parent=1 // pred_fallthru
      _
    // Predicated region
    $region6: #{tpu_custom_call.1} parent=1 // pred_check
      _
    $region7: #{tpu_custom_call.1} parent=1 // pred_check_branch
      %23 = sbr.rel (0) target = $region9
    $region8: #{tpu_custom_call.1} parent=1 // pred_region
      %s25 = ssub.s32 4096, 4096
      %26 = vsyncadd [#allocation6], %s25
      %s27 = sshll.u32 [#allocation5], 4
      %s28 = int_to_ptr.vmem [resolvable:$true] %s27
      %33 = dma.hbm_to_vmem [thread:$0]  %s1, 4096, %s28, [#allocation6], 128, 128, 8
    $region9: #{tpu_custom_call.1} parent=1 // pred_fallthru
      _
    // Predicated region
    $region10: #{tpu_custom_call.1} parent=1 // pred_check
      _
    $region11: #{tpu_custom_call.1} parent=1 // pred_check_branch
      %35 = sbr.rel (0) target = $region13
    $region12: #{tpu_custom_call.1} parent=1 // pred_region
      %36 = dma.done [#allocation3], 256
    $region13: #{tpu_custom_call.1} parent=1 // pred_fallthru
      _
    // Predicated region
    $region14: #{tpu_custom_call.1} parent=1 // pred_check
      _
    $region15: #{tpu_custom_call.1} parent=1 // pred_check_branch
      %38 = sbr.rel (0) target = $region17
    $region16: #{tpu_custom_call.1} parent=1 // pred_region
      %39 = dma.done [#allocation6], 4096
    $region17: #{tpu_custom_call.1} parent=1 // pred_fallthru
      _
    %v40 = vld [vmem:[#allocation2] sm:$0xff]
    %v41 = vld [vmem:[#allocation2 + $0x8] sm:$0xff]
    %v42 = vld [vmem:[#allocation5] sm:$0xff]
    %v43 = vld [vmem:[#allocation5 + $0x8] sm:$0xff]
    %v44 = vld [vmem:[#allocation5 + $0x10] sm:$0xff]
    %v45 = vld [vmem:[#allocation5 + $0x18] sm:$0xff]
    %v46 = vld [vmem:[#allocation5 + $0x20] sm:$0xff]
    %v47 = vld [vmem:[#allocation5 + $0x28] sm:$0xff]
    %v48 = vld [vmem:[#allocation5 + $0x30] sm:$0xff]
    %v49 = vld [vmem:[#allocation5 + $0x38] sm:$0xff]
    %v50 = vld [vmem:[#allocation5 + $0x40] sm:$0xff]
    %v51 = vld [vmem:[#allocation5 + $0x48] sm:$0xff]
    %v52 = vld [vmem:[#allocation5 + $0x50] sm:$0xff]
    %v53 = vld [vmem:[#allocation5 + $0x58] sm:$0xff]
    %v54 = vld [vmem:[#allocation5 + $0x60] sm:$0xff]
    %v55 = vld [vmem:[#allocation5 + $0x68] sm:$0xff]
    %v56 = vld [vmem:[#allocation5 + $0x70] sm:$0xff]
    %v57 = vld [vmem:[#allocation5 + $0x78] sm:$0xff]
    %v58 = vld [vmem:[#allocation5 + $0x80] sm:$0xff]
    %v59 = vld [vmem:[#allocation5 + $0x88] sm:$0xff]
    %v60 = vld [vmem:[#allocation5 + $0x90] sm:$0xff]
    %v61 = vld [vmem:[#allocation5 + $0x98] sm:$0xff]
    %v62 = vld [vmem:[#allocation5 + $0xa0] sm:$0xff]
    %v63 = vld [vmem:[#allocation5 + $0xa8] sm:$0xff]
    %v64 = vld [vmem:[#allocation5 + $0xb0] sm:$0xff]
    %v65 = vld [vmem:[#allocation5 + $0xb8] sm:$0xff]
    %v66 = vld [vmem:[#allocation5 + $0xc0] sm:$0xff]
    %v67 = vld [vmem:[#allocation5 + $0xc8] sm:$0xff]
    %v68 = vld [vmem:[#allocation5 + $0xd0] sm:$0xff]
    %v69 = vld [vmem:[#allocation5 + $0xd8] sm:$0xff]
    %v70 = vld [vmem:[#allocation5 + $0xe0] sm:$0xff]
    %v71 = vld [vmem:[#allocation5 + $0xe8] sm:$0xff]
    %v72 = vld [vmem:[#allocation5 + $0xf0] sm:$0xff]
    %v73 = vld [vmem:[#allocation5 + $0xf8] sm:$0xff]
    %v76 = vcombine.low %v40, %v41
    %v77 = vcombine.high %v40, %v41
    %80 = vmatprep.subr.mxu0 0.0
    %81 = vmatpush1.msra.mxu0 %v42
    %82 = vmatprep.subr.mxu0 0.0
    %83 = vmatpush1.msra.mxu0 %v43
    %84 = vmatprep.subr.mxu0 0.0
    %85 = vmatpush1.msra.mxu0 %v44
    %86 = vmatprep.subr.mxu0 0.0
    %87 = vmatpush1.msra.mxu0 %v45
    %88 = vmatprep.subr.mxu0 0.0
    %89 = vmatpush1.msra.mxu0 %v46
    %90 = vmatprep.subr.mxu0 0.0
    %91 = vmatpush1.msra.mxu0 %v47
    %92 = vmatprep.subr.mxu0 0.0
    %93 = vmatpush1.msra.mxu0 %v48
    %94 = vmatprep.subr.mxu0 0.0
    %95 = vmatpush1.msra.mxu0 %v49
    %96 = vmatprep.subr.mxu0 0.0
    %97 = vmatpush1.msra.mxu0 %v50
    %98 = vmatprep.subr.mxu0 0.0
    %99 = vmatpush1.msra.mxu0 %v51
    %100 = vmatprep.subr.mxu0 0.0
    %101 = vmatpush1.msra.mxu0 %v52
    %102 = vmatprep.subr.mxu0 0.0
    %103 = vmatpush1.msra.mxu0 %v53
    %104 = vmatprep.subr.mxu0 0.0
    %105 = vmatpush1.msra.mxu0 %v54
    %106 = vmatprep.subr.mxu0 0.0
    %107 = vmatpush1.msra.mxu0 %v55
    %108 = vmatprep.subr.mxu0 0.0
    %109 = vmatpush1.msra.mxu0 %v56
    %110 = vmatprep.subr.mxu0 0.0
    %111 = vmatpush1.msra.mxu0 %v57
    %112 = vmatprep.subr.mxu0 0.0
    %113 = vmatpush1.msra.mxu0 %v58
    %114 = vmatprep.subr.mxu0 0.0
    %115 = vmatpush1.msra.mxu0 %v59
    %116 = vmatprep.subr.mxu0 0.0
    %117 = vmatpush1.msra.mxu0 %v60
    %118 = vmatprep.subr.mxu0 0.0
    %119 = vmatpush1.msra.mxu0 %v61
    %120 = vmatprep.subr.mxu0 0.0
    %121 = vmatpush1.msra.mxu0 %v62
    %122 = vmatprep.subr.mxu0 0.0
    %123 = vmatpush1.msra.mxu0 %v63
    %124 = vmatprep.subr.mxu0 0.0
    %125 = vmatpush1.msra.mxu0 %v64
    %126 = vmatprep.subr.mxu0 0.0
    %127 = vmatpush1.msra.mxu0 %v65
    %128 = vmatprep.subr.mxu0 0.0
    %129 = vmatpush1.msra.mxu0 %v66
    %130 = vmatprep.subr.mxu0 0.0
    %131 = vmatpush1.msra.mxu0 %v67
    %132 = vmatprep.subr.mxu0 0.0
    %133 = vmatpush1.msra.mxu0 %v68
    %134 = vmatprep.subr.mxu0 0.0
    %135 = vmatpush1.msra.mxu0 %v69
    %136 = vmatprep.subr.mxu0 0.0
    %137 = vmatpush1.msra.mxu0 %v70
    %138 = vmatprep.subr.mxu0 0.0
    %139 = vmatpush1.msra.mxu0 %v71
    %140 = vmatprep.subr.mxu0 0.0
    %141 = vmatpush1.msra.mxu0 %v72
    %142 = vmatprep.subr.mxu0 0.0
    %143 = vmatpush1.msra.mxu0 %v73
    %144 = vmatprep.mubr.f32.mxu0 %v77
    %145 = vmatmul.mubr.f32.gmra.mrb[0].mxu0 %v76
    %v146 = vpop.f32.mrb[0].mxu0
    %v147 = vadd.f32 0.0, %v146
    %v148 = vpop.f32.mrb[0].mxu0
    %149 = vdwg.mxu0
    %150 = vst [vmem:[#allocation7] sm:$0xff] %v147
    // Predicated region
    $region18: #{tpu_custom_call.1} parent=1 // pred_check
      _
    $region19: #{tpu_custom_call.1} parent=1 // pred_check_branch
      %152 = sbr.rel (0) target = $region21
    $region20: #{tpu_custom_call.1} parent=1 // pred_region
      %s154 = ssub.s32 128, 64
      %155 = vsyncadd [#allocation4], %s154
      %s156 = sshll.u32 [#allocation7], 4
      %s157 = int_to_ptr.vmem [resolvable:$true] %s156
      %162 = dma.vmem_to_hbm [thread:$0]  %s157, 64, %s2, [#allocation4], 64, 64, 4
    $region21: #{tpu_custom_call.1} parent=1 // pred_fallthru
      _
    // Predicated region
    $region22: #{tpu_custom_call.1} parent=1 // pred_check
      _
    $region23: #{tpu_custom_call.1} parent=1 // pred_check_branch
      %164 = sbr.rel (0) target = $region25
    $region24: #{tpu_custom_call.1} parent=1 // pred_region
      %165 = dma.done [#allocation4], 128
    $region25: #{tpu_custom_call.1} parent=1 // pred_fallthru
      _
    %166 = vsyncpa [#allocation3], 1
    %167 = vsyncpa [#allocation6], 1
    %168 = vsyncpa [#allocation4], 1

</llo_original>
